<compile_context>
chip_gen: v5e
topology: v5e:2x2
jax: 0.10.0
libtpu: 0.0.40
codegen_flags: <defaults>
</compile_context>

<pallas_src>
import functools

import jax
import jax.numpy as jnp
from jax.experimental import pallas as pl
from jax.experimental.pallas import tpu as pltpu


def _kd_pointwise_kernel(p_ref, s_ref, out_ref, *, inv_t):
    """One (batch, N-tile) step.

    p_ref, s_ref: (1, C, tn) tiles of student / teacher logits (any float dtype).
    out_ref:      (1, 1, tn) f32 per-position KL terms (already summed over C).
    """
    p = p_ref[0].astype(jnp.float32) * inv_t  # (C, tn)
    s = s_ref[0].astype(jnp.float32) * inv_t  # (C, tn)

    # "input" of KLDivLoss: softmax probabilities of the student (bug in the
    # original module reproduced faithfully -- it is NOT log-softmax).
    mp = jnp.max(p, axis=0, keepdims=True)            # (1, tn) sublane reduce
    ep = jnp.exp(p - mp)
    x = ep * (1.0 / jnp.sum(ep, axis=0, keepdims=True))

    # target: softmax probabilities of the teacher, plus their log.
    ms = jnp.max(s, axis=0, keepdims=True)
    zs = s - ms
    es = jnp.exp(zs)
    ds = jnp.sum(es, axis=0, keepdims=True)            # (1, tn)
    y = es * (1.0 / ds)
    log_y = zs - jnp.log(ds)

    # KLDivLoss pointwise term y * (log y - x), summed over channels.
    # (y > 0 always from softmax, so PyTorch's target==0 special case is moot.)
    out_ref[0] = jnp.sum(y * (log_y - x), axis=0, keepdims=True)  # (1, tn)


def _pick_tile(n):
    """Largest lane-aligned N-tile that divides n (falls back to full n)."""
    for t in (512, 256, 128):
        if n % t == 0:
            return t
    return n  # full extent is always a legal block dim


def criterion_kd(preds, soft, T=1.0):
    """preds, soft: (B, C, H, W) float arrays. Returns scalar KD loss (f32)."""
    if preds.shape != soft.shape:
        # Reference module falls back to KLDiv(softmax(soft), softmax(soft)).
        print('shape dismatch')
        preds = soft

    B, C, H, W = preds.shape
    N = H * W
    tn = _pick_tile(N)

    # NCHW -> (B, C, N): minor-dim merge only (spatial positions lane-dense).
    p = preds.reshape(B, C, N)
    s = soft.reshape(B, C, N)

    kernel = functools.partial(_kd_pointwise_kernel, inv_t=1.0 / float(T))

    per_pos = pl.pallas_call(
        kernel,
        out_shape=jax.ShapeDtypeStruct((B, 1, N), jnp.float32),
        grid_spec=pltpu.PrefetchScalarGridSpec(
            num_scalar_prefetch=0,
            grid=(B, N // tn),
            in_specs=[
                pl.BlockSpec((1, C, tn), lambda b, j: (b, 0, j)),
                pl.BlockSpec((1, C, tn), lambda b, j: (b, 0, j)),
            ],
            out_specs=pl.BlockSpec((1, 1, tn), lambda b, j: (b, 0, j)),
        ),
        compiler_params=pltpu.CompilerParams(
            # Every grid step writes its own output block -> fully parallel
            # (lets v7x shard the grid across both TensorCores).
            dimension_semantics=("parallel", "parallel"),
        ),
    )(p, s)

    # KLDivLoss(reduction='mean'): mean over all B*C*H*W elements (glue).
    return jnp.sum(per_pos) / jnp.float32(B * C * N)


def _reference(preds, soft, T=1.0):
    """Pure-JAX reference mirroring the PyTorch module."""
    x = jax.nn.softmax(preds / T, axis=1)
    y = jax.nn.softmax(soft / T, axis=1)
    return jnp.mean(y * (jnp.log(y) - x))


if __name__ == "__main__":
    key = jax.random.PRNGKey(0)
    k1, k2 = jax.random.split(key)
    B, C, H, W = 2, 4, 16, 16
    preds = jax.random.normal(k1, (B, C, H, W), dtype=jnp.float32)
    soft = jax.random.normal(k2, (B, C, H, W), dtype=jnp.float32)

    loss = jax.block_until_ready(criterion_kd(preds, soft))
    ref = jax.block_until_ready(_reference(preds, soft))
    assert jnp.allclose(loss, ref, rtol=1e-5, atol=1e-6), (loss, ref)

    print("KERNEL_OK")
</pallas_src>

<mosaic_0001>
module attributes {stable_mosaic.version = 11 : i64} {
  func.func @_kd_pointwise_kernel(%arg0: i32, %arg1: i32, %arg2: memref<1x4x256xf32, #tpu.memory_space<vmem>>, %arg3: memref<1x4x256xf32, #tpu.memory_space<vmem>>, %arg4: memref<1x1x256xf32, #tpu.memory_space<vmem>>) attributes {dimension_semantics = [#tpu.dimension_semantics<parallel>, #tpu.dimension_semantics<parallel>], iteration_bounds = array<i64: 2, 1>, scalar_prefetch = 0 : i64, scratch_operands = 0 : i64, tpu.core_type = #tpu.core_type<tc>, window_params = [{transform_indices = @transform_0, window_bounds = array<i64: 1, 4, 256>}, {transform_indices = @transform_1, window_bounds = array<i64: 1, 4, 256>}, {transform_indices = @transform_2, window_bounds = array<i64: 1, 1, 256>}]} {
    %c0 = arith.constant 0 : index
    %c0_0 = arith.constant 0 : index
    %c0_1 = arith.constant 0 : index
    %0 = vector.load %arg2[%c0, %c0_0, %c0_1] : memref<1x4x256xf32, #tpu.memory_space<vmem>>, vector<1x4x256xf32>
    %1 = vector.shape_cast %0 : vector<1x4x256xf32> to vector<4x256xf32>
    %cst = arith.constant 1.000000e+00 : f32
    %2 = vector.broadcast %cst : f32 to vector<4x256xf32>
    %3 = arith.mulf %1, %2 : vector<4x256xf32>
    %c0_2 = arith.constant 0 : index
    %c0_3 = arith.constant 0 : index
    %c0_4 = arith.constant 0 : index
    %4 = vector.load %arg3[%c0_2, %c0_3, %c0_4] : memref<1x4x256xf32, #tpu.memory_space<vmem>>, vector<1x4x256xf32>
    %5 = vector.shape_cast %4 : vector<1x4x256xf32> to vector<4x256xf32>
    %cst_5 = arith.constant 1.000000e+00 : f32
    %6 = vector.broadcast %cst_5 : f32 to vector<4x256xf32>
    %7 = arith.mulf %5, %6 : vector<4x256xf32>
    %cst_6 = arith.constant dense<0xFF800000> : vector<256xf32>
    %8 = vector.multi_reduction <maximumf>, %3, %cst_6 [0] : vector<4x256xf32> to vector<256xf32>
    %9 = vector.shape_cast %8 : vector<256xf32> to vector<1x256xf32>
    %10 = vector.broadcast %9 : vector<1x256xf32> to vector<4x256xf32>
    %11 = arith.subf %3, %10 : vector<4x256xf32>
    %12 = math.exp %11 : vector<4x256xf32>
    %cst_7 = arith.constant dense<0.000000e+00> : vector<256xf32>
    %13 = vector.multi_reduction <add>, %12, %cst_7 [0] : vector<4x256xf32> to vector<256xf32>
    %14 = vector.shape_cast %13 : vector<256xf32> to vector<1x256xf32>
    %cst_8 = arith.constant 1.000000e+00 : f32
    %15 = vector.broadcast %cst_8 : f32 to vector<1x256xf32>
    %16 = arith.divf %15, %14 : vector<1x256xf32>
    %17 = vector.broadcast %16 : vector<1x256xf32> to vector<4x256xf32>
    %18 = arith.mulf %12, %17 : vector<4x256xf32>
    %cst_9 = arith.constant dense<0xFF800000> : vector<256xf32>
    %19 = vector.multi_reduction <maximumf>, %7, %cst_9 [0] : vector<4x256xf32> to vector<256xf32>
    %20 = vector.shape_cast %19 : vector<256xf32> to vector<1x256xf32>
    %21 = vector.broadcast %20 : vector<1x256xf32> to vector<4x256xf32>
    %22 = arith.subf %7, %21 : vector<4x256xf32>
    %23 = math.exp %22 : vector<4x256xf32>
    %cst_10 = arith.constant dense<0.000000e+00> : vector<256xf32>
    %24 = vector.multi_reduction <add>, %23, %cst_10 [0] : vector<4x256xf32> to vector<256xf32>
    %25 = vector.shape_cast %24 : vector<256xf32> to vector<1x256xf32>
    %cst_11 = arith.constant 1.000000e+00 : f32
    %26 = vector.broadcast %cst_11 : f32 to vector<1x256xf32>
    %27 = arith.divf %26, %25 : vector<1x256xf32>
    %28 = vector.broadcast %27 : vector<1x256xf32> to vector<4x256xf32>
    %29 = arith.mulf %23, %28 : vector<4x256xf32>
    %30 = math.log %25 : vector<1x256xf32>
    %31 = vector.broadcast %30 : vector<1x256xf32> to vector<4x256xf32>
    %32 = arith.subf %22, %31 : vector<4x256xf32>
    %33 = arith.subf %32, %18 : vector<4x256xf32>
    %34 = arith.mulf %29, %33 : vector<4x256xf32>
    %cst_12 = arith.constant dense<0.000000e+00> : vector<256xf32>
    %35 = vector.multi_reduction <add>, %34, %cst_12 [0] : vector<4x256xf32> to vector<256xf32>
    %36 = vector.shape_cast %35 : vector<256xf32> to vector<1x256xf32>
    %c0_13 = arith.constant 0 : index
    %c0_14 = arith.constant 0 : index
    %c0_15 = arith.constant 0 : index
    %37 = vector.load %arg4[%c0_13, %c0_14, %c0_15] : memref<1x1x256xf32, #tpu.memory_space<vmem>>, vector<1x1x256xf32>
    %38 = vector.shape_cast %37 : vector<1x1x256xf32> to vector<1x256xf32>
    %39 = vector.shape_cast %36 : vector<1x256xf32> to vector<1x1x256xf32>
    tpu.vector_store %arg4[%c0_13, %c0_14, %c0_15], %39 {strides = array<i32>} : memref<1x1x256xf32, #tpu.memory_space<vmem>>, vector<1x1x256xf32>,
    return
  }
  func.func @transform_0(%arg0: i32, %arg1: i32) -> (i32, i32, i32) {
    %c0_i32 = arith.constant 0 : i32
    %c0_i32_0 = arith.constant 0 : i32
    return %arg0, %c0_i32, %arg1 : i32, i32, i32
  }
  func.func @transform_1(%arg0: i32, %arg1: i32) -> (i32, i32, i32) {
    %c0_i32 = arith.constant 0 : i32
    %c0_i32_0 = arith.constant 0 : i32
    return %arg0, %c0_i32, %arg1 : i32, i32, i32
  }
  func.func @transform_2(%arg0: i32, %arg1: i32) -> (i32, i32, i32) {
    %c0_i32 = arith.constant 0 : i32
    %c0_i32_0 = arith.constant 0 : i32
    return %arg0, %c0_i32, %arg1 : i32, i32, i32
  }
}

</mosaic_0001>

<llo_original>
// kernel: tpu_custom_call.1
$region0: #{tpu_custom_call.1}
  #allocation0 [shape = 'u32[]', space=smem, size = 0x4, offset = 0x4, fixed_abs, tag = 'smem constant byte address 0x4 - core index']
  #allocation1 [shape = 'u32[72,128]{1,0:T(1,128)}', space=vmem, size = 0x9000, scoped, tag = 'internal scratch']
  %s0 = inlined_call_operand.hbm [shape: f32[2,4,256], index: 0, kind: input, shape index: {}]
  %s1 = inlined_call_operand.hbm [shape: f32[2,4,256], index: 1, kind: input, shape index: {}]
  %s2 = inlined_call_operand.hbm [shape: f32[2,1,256], index: 2, kind: output, shape index: {}]
  %s3 = sld [smem:[#allocation0]]
  $region49: #{tpu_custom_call.1} parent=0
    _
  %s5 = ssub.s32 1, %s3
  %s6 = scalar_select 0, %s5, %s3
  $region1: #{tpu_custom_call.1} parent=0
    #allocation2 [shape = 'u8[8192]{0}', space=vmem, size = 0x2000, scoped, tag = 'input window, operand 0']
    #allocation3 [shape = 's32[2]{0}', space=sflag, size = 0x8, scoped, tag = 'scoped memory for tpu_custom_call.1']
    #allocation4 [shape = 's32[2]{0}', space=sflag, size = 0x8, scoped, tag = 'scoped memory for tpu_custom_call.1']
    #allocation5 [shape = 'u8[8192]{0}', space=vmem, size = 0x2000, scoped, tag = 'input window, operand 1']
    #allocation6 [shape = 's32[2]{0}', space=sflag, size = 0x8, scoped, tag = 'scoped memory for tpu_custom_call.1']
    #allocation7 [shape = 'u8[2048]{0}', space=vmem, size = 0x800, scoped, tag = 'output window, operand 0']
    %7 = vsyncpa [#allocation3], 0
    %s8 = scalar_lea.sflag [#allocation3], 1
    %9 = vsyncpa %s8, 0
    %10 = vsyncpa [#allocation6], 0
    %s11 = scalar_lea.sflag [#allocation6], 1
    %12 = vsyncpa %s11, 0
    %13 = vsyncpa [#allocation4], 0
    %s14 = scalar_lea.sflag [#allocation4], 1
    %15 = vsyncpa %s14, 0
    loop: start=0, step=1, limit=4
    $region2: #{tpu_custom_call.1} parent=1 // loop_pre_header
      _
    $region3: #{tpu_custom_call.1} parent=1 // loop_header
      %s17 = sphi 0, %s21
      %p18 = scmp.ge.s32.totalorder %s17, 4
      %s24 = sphi 0, %s36
      %s25 = sphi 0, %s32
      %s26 = sphi 0, %s24
      %s27 = sphi 0, %s25
      %s28 = sphi 0, %s26
      %s29 = sphi 0, %s27
      %s41 = sphi 0, %s43
      %s44 = sphi 0, %s41
      %s45 = sphi 0, %s44
      %s61 = sphi 0, %s45
      %s69 = sphi 0, %s71
      %s72 = sphi 0, %s69
      %s73 = sphi 0, %s72
      %s89 = sphi 0, %s73
      %s97 = sphi 0, %s99
      %s100 = sphi 0, %s97
      %s101 = sphi 0, %s100
      %s117 = sphi 0, %s101
    $region4: #{tpu_custom_call.1} parent=1 // loop_header_branch
      %20 = sbr.rel (%p18) target = $region8
    $region5: #{tpu_custom_call.1} parent=1 // loop_body
      %s22 = ssub.s32 %s17, 1
      %s23 = ssub.s32 %s17, 2
      %s30 = sadd.s32 1, %s25
      %p31 = scmp.ge.s32.totalorder %s30, 1
      %s32 = scalar_select %p31, 0, %s30
      %s33 = sadd.s32 1, %s24
      %s34 = scalar_select %p31, %s33, %s24
      %p35 = scmp.ge.s32.totalorder %s34, 2
      %s36 = scalar_select %p35, 0, %s34
      %s37 = ssub.s32 %s24, %s36
      %s38 = ssub.s32 %s25, %s32
      %s39 = sor.u32 %s37, %s38
      %p40 = scmp.eq.s32.totalorder %s39, 0
      %s42 = sadd.s32 %s41, 1
      %s43 = scalar_select %p40, %s41, %s42
      %p46 = pneg %p40
      %p47 = scmp.eq.s32.totalorder %s17, 1
      %p48 = por %p46, %p47
      %p49 = scmp.ne.s32.totalorder %s41, %s44
      %p50 = scmp.eq.s32.totalorder %s17, 0
      %p51 = por %p49, %p50
      %p52 = scmp.ne.s32.totalorder %s41, %s44
      %p53 = scmp.eq.s32.totalorder %s22, 1
      %p54 = por %p52, %p53
      %p55 = scmp.ne.s32.totalorder %s44, %s45
      %p56 = scmp.eq.s32.totalorder %s22, 0
      %p57 = por %p55, %p56
      %p58 = scmp.ne.s32.totalorder %s44, %s45
      %p59 = scmp.eq.s32.totalorder %s23, 1
      %p60 = por %p58, %p59
      %p62 = scmp.ne.s32.totalorder %s45, %s61
      %p63 = scmp.eq.s32.totalorder %s23, 0
      %p64 = por %p62, %p63
      %s65 = ssub.s32 %s24, %s36
      %s66 = ssub.s32 %s25, %s32
      %s67 = sor.u32 %s65, %s66
      %p68 = scmp.eq.s32.totalorder %s67, 0
      %s70 = sadd.s32 %s69, 1
      %s71 = scalar_select %p68, %s69, %s70
      %p74 = pneg %p68
      %p75 = scmp.eq.s32.totalorder %s17, 1
      %p76 = por %p74, %p75
      %p77 = scmp.ne.s32.totalorder %s69, %s72
      %p78 = scmp.eq.s32.totalorder %s17, 0
      %p79 = por %p77, %p78
      %p80 = scmp.ne.s32.totalorder %s69, %s72
      %p81 = scmp.eq.s32.totalorder %s22, 1
      %p82 = por %p80, %p81
      %p83 = scmp.ne.s32.totalorder %s72, %s73
      %p84 = scmp.eq.s32.totalorder %s22, 0
      %p85 = por %p83, %p84
      %p86 = scmp.ne.s32.totalorder %s72, %s73
      %p87 = scmp.eq.s32.totalorder %s23, 1
      %p88 = por %p86, %p87
      %p90 = scmp.ne.s32.totalorder %s73, %s89
      %p91 = scmp.eq.s32.totalorder %s23, 0
      %p92 = por %p90, %p91
      %s93 = ssub.s32 %s24, %s36
      %s94 = ssub.s32 %s25, %s32
      %s95 = sor.u32 %s93, %s94
      %p96 = scmp.eq.s32.totalorder %s95, 0
      %s98 = sadd.s32 %s97, 1
      %s99 = scalar_select %p96, %s97, %s98
      %p102 = pneg %p96
      %p103 = scmp.eq.s32.totalorder %s17, 1
      %p104 = por %p102, %p103
      %p105 = scmp.ne.s32.totalorder %s97, %s100
      %p106 = scmp.eq.s32.totalorder %s17, 0
      %p107 = por %p105, %p106
      %p108 = scmp.ne.s32.totalorder %s97, %s100
      %p109 = scmp.eq.s32.totalorder %s22, 1
      %p110 = por %p108, %p109
      %p111 = scmp.ne.s32.totalorder %s100, %s101
      %p112 = scmp.eq.s32.totalorder %s22, 0
      %p113 = por %p111, %p112
      %p114 = scmp.ne.s32.totalorder %s100, %s101
      %p115 = scmp.eq.s32.totalorder %s23, 1
      %p116 = por %p114, %p115
      %p118 = scmp.ne.s32.totalorder %s101, %s117
      %p119 = scmp.eq.s32.totalorder %s23, 0
      %p120 = por %p118, %p119
      %p121 = scmp.le.s32.totalorder 1, %s17
      %p122 = scmp.lt.s32.totalorder %s17, 3
      %p123 = pnand %p121, %p122
      %p124 = pneg %p123
      // Predicated region
      $region9: #{tpu_custom_call.1} parent=5 // pred_check
        _
      $region10: #{tpu_custom_call.1} parent=5 // pred_check_branch
        %126 = sbr.rel (%p123) target = $region12
      $region11: #{tpu_custom_call.1} parent=5 // pred_region
        %s127 = ssub.s32 %s17, 1
      $region12: #{tpu_custom_call.1} parent=5 // pred_fallthru
        _
      %p128 = scmp.lt.s32.totalorder %s17, 2
      // Predicated region
      $region13: #{tpu_custom_call.1} parent=5 // pred_check
        %p129 = pneg %p128
      $region14: #{tpu_custom_call.1} parent=5 // pred_check_branch
        %131 = sbr.rel (%p129) target = $region16
      $region15: #{tpu_custom_call.1} parent=5 // pred_region
        // Predicated region
        $region17: #{tpu_custom_call.1} parent=15 // pred_check
          %p132 = pneg %p51
        $region18: #{tpu_custom_call.1} parent=15 // pred_check_branch
          %134 = sbr.rel (%p132) target = $region20
        $region19: #{tpu_custom_call.1} parent=15 // pred_region
          %s135 = sand.u32 %s41, 1
          %s136 = scalar_lea.sflag [#allocation3], %s135
          %s137 = sand.u32 %s41, 1
          %s138 = smul.addr %s137, 8
          %s139 = scalar_lea.vmem [#allocation2], %s138
          %s140 = smul.u32 2, %s25
          %142 = vsyncadd %s136, 0
          %s143 = smul.addr %s24, 2
          %s144 = sadd.s32 %s140, %s143
          %s145 = smul.addr %s144, 4
          %s146 = scalar_lea.hbm %s0, %s145
          %s148 = sshll.u32 %s146, 4
          %s149 = int_to_ptr.hbm [resolvable:$true] %s148
          %s150 = sshll.u32 %s139, 4
          %s151 = int_to_ptr.vmem [resolvable:$true] %s150
          %153 = dma.hbm_to_vmem [thread:$0]  %s149, 128, %s151, %s136
        $region20: #{tpu_custom_call.1} parent=15 // pred_fallthru
          _
        // Predicated region
        $region21: #{tpu_custom_call.1} parent=15 // pred_check
          %p154 = pneg %p79
        $region22: #{tpu_custom_call.1} parent=15 // pred_check_branch
          %156 = sbr.rel (%p154) target = $region24
        $region23: #{tpu_custom_call.1} parent=15 // pred_region
          %s157 = sand.u32 %s69, 1
          %s158 = scalar_lea.sflag [#allocation6], %s157
          %s159 = sand.u32 %s69, 1
          %s160 = smul.addr %s159, 8
          %s161 = scalar_lea.vmem [#allocation5], %s160
          %s162 = smul.u32 2, %s25
          %164 = vsyncadd %s158, 0
          %s165 = smul.addr %s24, 2
          %s166 = sadd.s32 %s162, %s165
          %s167 = smul.addr %s166, 4
          %s168 = scalar_lea.hbm %s1, %s167
          %s170 = sshll.u32 %s168, 4
          %s171 = int_to_ptr.hbm [resolvable:$true] %s170
          %s172 = sshll.u32 %s161, 4
          %s173 = int_to_ptr.vmem [resolvable:$true] %s172
          %175 = dma.hbm_to_vmem [thread:$0]  %s171, 128, %s173, %s158
        $region24: #{tpu_custom_call.1} parent=15 // pred_fallthru
          _
      $region16: #{tpu_custom_call.1} parent=5 // pred_fallthru
        _
      %p176 = scmp.le.s32.totalorder 1, %s17
      %p177 = scmp.lt.s32.totalorder %s17, 3
      %p178 = pnand %p176, %p177
      %p179 = pneg %p178
      // Predicated region
      $region25: #{tpu_custom_call.1} parent=5 // pred_check
        _
      $region26: #{tpu_custom_call.1} parent=5 // pred_check_branch
        %181 = sbr.rel (%p178) target = $region28
      $region27: #{tpu_custom_call.1} parent=5 // pred_region
        %s182 = ssub.s32 %s17, 1
        %s183 = sand.u32 %s44, 1
        %s184 = scalar_lea.sflag [#allocation3], %s183
        %s185 = sand.u32 %s44, 1
        %s186 = smul.addr %s185, 8
        %s187 = scalar_lea.vmem [#allocation2], %s186
        // Predicated region
        $region29: #{tpu_custom_call.1} parent=27 // pred_check
          %p188 = pneg %p57
        $region30: #{tpu_custom_call.1} parent=27 // pred_check_branch
          %190 = sbr.rel (%p188) target = $region32
        $region31: #{tpu_custom_call.1} parent=27 // pred_region
          %192 = dma.done %s184, 128
        $region32: #{tpu_custom_call.1} parent=27 // pred_fallthru
          _
        %s193 = sand.u32 %s72, 1
        %s194 = scalar_lea.sflag [#allocation6], %s193
        %s195 = sand.u32 %s72, 1
        %s196 = smul.addr %s195, 8
        %s197 = scalar_lea.vmem [#allocation5], %s196
        // Predicated region
        $region33: #{tpu_custom_call.1} parent=27 // pred_check
          %p198 = pneg %p85
        $region34: #{tpu_custom_call.1} parent=27 // pred_check_branch
          %200 = sbr.rel (%p198) target = $region36
        $region35: #{tpu_custom_call.1} parent=27 // pred_region
          %202 = dma.done %s194, 128
        $region36: #{tpu_custom_call.1} parent=27 // pred_fallthru
          _
        %s203 = sand.u32 %s44, 1
        %s204 = scalar_lea.sflag [#allocation3], %s203
        %s205 = sand.u32 %s44, 1
        %s206 = smul.addr %s205, 8
        %s207 = scalar_lea.vmem [#allocation2], %s206
        %p208 = pneg %p57
        %p209 = pneg %p54
        %s210 = sand.u32 %s72, 1
        %s211 = scalar_lea.sflag [#allocation6], %s210
        %s212 = sand.u32 %s72, 1
        %s213 = smul.addr %s212, 8
        %s214 = scalar_lea.vmem [#allocation5], %s213
        %p215 = pneg %p85
        %p216 = pneg %p82
        %p217 = pneg %p113
        %p218 = pneg %p110
        %s219 = sand.u32 %s100, 1
        %s220 = scalar_lea.sflag [#allocation4], %s219
        %s221 = sand.u32 %s100, 1
        %s222 = smul.addr %s221, 2
        %s223 = scalar_lea.vmem [#allocation7], %s222
        %s224 = smul.u32 2, %s27
        %s225 = smul.u32 2, %s27
        %s226 = smul.u32 2, %s27
        %v227 = vld [vmem:[%s187] sm:$0xff]
        %v228 = vld [vmem:[%s197] sm:$0xff]
        %230 = vst [vmem:[#allocation1] ss:$2 sm:$0xff] %v227
        %v231 = vld.sshfl [vmem:[#allocation1] sm:$0xff pattern:$0x75316420]
        %v232 = vld.sshfl [vmem:[#allocation1 + $0x8] sm:$0xff pattern:$0x75316420]
        %vm235 = vcmask 1043456
        %v236 = vsel %vm235, %v231, -inf
        %v237 = vrot.slane %v236, 4
        %v238 = vmax.f32 %v236, %v237
        %v239 = vrot.slane %v238, 2
        %v240 = vmax.f32 %v238, %v239
        %v241 = vrot.slane %v240, 1
        %v242 = vmax.f32 %v240, %v241
        %v243 = vsel %vm235, %v232, -inf
        %v244 = vrot.slane %v243, 4
        %v245 = vmax.f32 %v243, %v244
        %v246 = vrot.slane %v245, 2
        %v247 = vmax.f32 %v245, %v246
        %v248 = vrot.slane %v247, 1
        %v249 = vmax.f32 %v247, %v248
        %v252 = vrot.slane %v249, 4
        %v253 = vsel %vm235, %v242, %v252
        %v255 = vsub.f32 %v227, %v253
        %v256 = vmul.f32 %v255, 1.442695
        %v257 = vpow.pop %v256
        %259 = vst [vmem:[#allocation1] ss:$2 sm:$0xff] %v257
        %v260 = vld.sshfl [vmem:[#allocation1] sm:$0xff pattern:$0x75316420]
        %v261 = vld.sshfl [vmem:[#allocation1 + $0x8] sm:$0xff pattern:$0x75316420]
        %v264 = vsel %vm235, %v260, 0.0
        %v265 = vrot.slane %v264, 4
        %v266 = vadd.f32 %v264, %v265
        %v267 = vrot.slane %v266, 2
        %v268 = vadd.f32 %v266, %v267
        %v269 = vrot.slane %v268, 1
        %v270 = vadd.f32 %v268, %v269
        %v271 = vsel %vm235, %v261, 0.0
        %v272 = vrot.slane %v271, 4
        %v273 = vadd.f32 %v271, %v272
        %v274 = vrot.slane %v273, 2
        %v275 = vadd.f32 %v273, %v274
        %v276 = vrot.slane %v275, 1
        %v277 = vadd.f32 %v275, %v276
        %v278 = vrcp.pop %v270
        %v279 = vmul.f32 %v270, %v278
        %v280 = vsub.f32 1.0, %v279
        %v281 = vmul.f32 %v278, %v280
        %v282 = vadd.f32 %v278, %v281
        %vm283 = vweird.f32 %v270
        %vm284 = vweird.f32 %v278
        %vm285 = vmor %vm283, %vm284
        %v286 = vsel %vm285, %v278, %v282
        %v287 = vand.u32 2147483647, %v270
        %vm288 = vcmp.eq.f32.partialorder %v287, 8.507059e+37
        %v289 = vand.u32 %v270, 2147483648
        %v290 = vor.u32 1.1754944e-38, %v289
        %v291 = vsel %vm288, %v290, %v286
        %v292 = vmul.f32 1.0, %v291
        %v293 = vrcp.pop %v277
        %v294 = vmul.f32 %v277, %v293
        %v295 = vsub.f32 1.0, %v294
        %v296 = vmul.f32 %v293, %v295
        %v297 = vadd.f32 %v293, %v296
        %vm298 = vweird.f32 %v277
        %vm299 = vweird.f32 %v293
        %vm300 = vmor %vm298, %vm299
        %v301 = vsel %vm300, %v293, %v297
        %v302 = vand.u32 2147483647, %v277
        %vm303 = vcmp.eq.f32.partialorder %v302, 8.507059e+37
        %v304 = vand.u32 %v277, 2147483648
        %v305 = vor.u32 1.1754944e-38, %v304
        %v306 = vsel %vm303, %v305, %v301
        %v307 = vmul.f32 1.0, %v306
        %v310 = vrot.slane %v307, 4
        %v311 = vsel %vm235, %v292, %v310
        %v313 = vmul.f32 %v257, %v311
        %315 = vst [vmem:[#allocation1] ss:$2 sm:$0xff] %v228
        %v316 = vld.sshfl [vmem:[#allocation1] sm:$0xff pattern:$0x75316420]
        %v317 = vld.sshfl [vmem:[#allocation1 + $0x8] sm:$0xff pattern:$0x75316420]
        %v320 = vsel %vm235, %v316, -inf
        %v321 = vrot.slane %v320, 4
        %v322 = vmax.f32 %v320, %v321
        %v323 = vrot.slane %v322, 2
        %v324 = vmax.f32 %v322, %v323
        %v325 = vrot.slane %v324, 1
        %v326 = vmax.f32 %v324, %v325
        %v327 = vsel %vm235, %v317, -inf
        %v328 = vrot.slane %v327, 4
        %v329 = vmax.f32 %v327, %v328
        %v330 = vrot.slane %v329, 2
        %v331 = vmax.f32 %v329, %v330
        %v332 = vrot.slane %v331, 1
        %v333 = vmax.f32 %v331, %v332
        %v336 = vrot.slane %v333, 4
        %v337 = vsel %vm235, %v326, %v336
        %v339 = vsub.f32 %v228, %v337
        %v340 = vmul.f32 %v339, 1.442695
        %v341 = vpow.pop %v340
        %343 = vst [vmem:[#allocation1] ss:$2 sm:$0xff] %v341
        %v344 = vld.sshfl [vmem:[#allocation1] sm:$0xff pattern:$0x75316420]
        %v345 = vld.sshfl [vmem:[#allocation1 + $0x8] sm:$0xff pattern:$0x75316420]
        %v348 = vsel %vm235, %v344, 0.0
        %v349 = vrot.slane %v348, 4
        %v350 = vadd.f32 %v348, %v349
        %v351 = vrot.slane %v350, 2
        %v352 = vadd.f32 %v350, %v351
        %v353 = vrot.slane %v352, 1
        %v354 = vadd.f32 %v352, %v353
        %v355 = vsel %vm235, %v345, 0.0
        %v356 = vrot.slane %v355, 4
        %v357 = vadd.f32 %v355, %v356
        %v358 = vrot.slane %v357, 2
        %v359 = vadd.f32 %v357, %v358
        %v360 = vrot.slane %v359, 1
        %v361 = vadd.f32 %v359, %v360
        %v362 = vrcp.pop %v354
        %v363 = vmul.f32 %v354, %v362
        %v364 = vsub.f32 1.0, %v363
        %v365 = vmul.f32 %v362, %v364
        %v366 = vadd.f32 %v362, %v365
        %vm367 = vweird.f32 %v354
        %vm368 = vweird.f32 %v362
        %vm369 = vmor %vm367, %vm368
        %v370 = vsel %vm369, %v362, %v366
        %v371 = vand.u32 2147483647, %v354
        %vm372 = vcmp.eq.f32.partialorder %v371, 8.507059e+37
        %v373 = vand.u32 %v354, 2147483648
        %v374 = vor.u32 1.1754944e-38, %v373
        %v375 = vsel %vm372, %v374, %v370
        %v376 = vmul.f32 1.0, %v375
        %v377 = vrcp.pop %v361
        %v378 = vmul.f32 %v361, %v377
        %v379 = vsub.f32 1.0, %v378
        %v380 = vmul.f32 %v377, %v379
        %v381 = vadd.f32 %v377, %v380
        %vm382 = vweird.f32 %v361
        %vm383 = vweird.f32 %v377
        %vm384 = vmor %vm382, %vm383
        %v385 = vsel %vm384, %v377, %v381
        %v386 = vand.u32 2147483647, %v361
        %vm387 = vcmp.eq.f32.partialorder %v386, 8.507059e+37
        %v388 = vand.u32 %v361, 2147483648
        %v389 = vor.u32 1.1754944e-38, %v388
        %v390 = vsel %vm387, %v389, %v385
        %v391 = vmul.f32 1.0, %v390
        %v394 = vrot.slane %v391, 4
        %v395 = vsel %vm235, %v376, %v394
        %v397 = vmul.f32 %v341, %v395
        %v398 = vlog2.pop %v354
        %v399 = vmul.f32 %v398, 0.6931472
        %v400 = vlog2.pop %v361
        %v401 = vmul.f32 %v400, 0.6931472
        %v404 = vrot.slane %v401, 4
        %v405 = vsel %vm235, %v399, %v404
        %v407 = vsub.f32 %v339, %v405
        %v408 = vsub.f32 %v407, %v313
        %v409 = vmul.f32 %v397, %v408
        %411 = vst [vmem:[#allocation1] ss:$2 sm:$0xff] %v409
        %v412 = vld.sshfl [vmem:[#allocation1] sm:$0xff pattern:$0x75316420]
        %v413 = vld.sshfl [vmem:[#allocation1 + $0x8] sm:$0xff pattern:$0x75316420]
        %v416 = vsel %vm235, %v412, 0.0
        %v417 = vrot.slane %v416, 4
        %v418 = vadd.f32 %v416, %v417
        %v419 = vrot.slane %v418, 2
        %v420 = vadd.f32 %v418, %v419
        %v421 = vrot.slane %v420, 1
        %v422 = vadd.f32 %v420, %v421
        %v423 = vsel %vm235, %v413, 0.0
        %v424 = vrot.slane %v423, 4
        %v425 = vadd.f32 %v423, %v424
        %v426 = vrot.slane %v425, 2
        %v427 = vadd.f32 %v425, %v426
        %v428 = vrot.slane %v427, 1
        %v429 = vadd.f32 %v427, %v428
        %v432 = vrot.slane %v429, 7
        %vm433 = vcmask 1040384
        %v434 = vsel %vm433, %v422, %v432
        %v436 = vlaneseq
        %vm437 = vcmp.ge.s32.totalorder %v436, 0
        %vm438 = vcmp.lt.s32.totalorder %v436, 256
        %vm439 = vmand %vm437, %vm438
        %440 = vst.msk [vmem:[%s223] sm:$0x3] %vm439, %v434
        %s441 = sand.u32 %s100, 1
        %s442 = scalar_lea.sflag [#allocation4], %s441
        %s443 = sand.u32 %s100, 1
        %s444 = smul.addr %s443, 2
        %s445 = scalar_lea.vmem [#allocation7], %s444
        // Predicated region
        $region37: #{tpu_custom_call.1} parent=27 // pred_check
          %p446 = pneg %p110
        $region38: #{tpu_custom_call.1} parent=27 // pred_check_branch
          %448 = sbr.rel (%p446) target = $region40
        $region39: #{tpu_custom_call.1} parent=27 // pred_region
          %s449 = smul.u32 2, %s27
          %451 = vsyncadd %s442, 0
          %s452 = smul.addr %s26, 2
          %s453 = sadd.s32 %s449, %s452
          %s454 = scalar_lea.hbm %s2, %s453
          %s456 = sshll.u32 %s445, 4
          %s457 = int_to_ptr.vmem [resolvable:$true] %s456
          %s458 = sshll.u32 %s454, 4
          %s459 = int_to_ptr.hbm [resolvable:$true] %s458
          %461 = dma.vmem_to_hbm [thread:$0]  %s457, 32, %s459, %s442
        $region40: #{tpu_custom_call.1} parent=27 // pred_fallthru
          _
      $region28: #{tpu_custom_call.1} parent=5 // pred_fallthru
        _
      %p462 = scmp.le.s32.totalorder 2, %s17
      // Predicated region
      $region41: #{tpu_custom_call.1} parent=5 // pred_check
        %p463 = pneg %p462
      $region42: #{tpu_custom_call.1} parent=5 // pred_check_branch
        %465 = sbr.rel (%p463) target = $region44
      $region43: #{tpu_custom_call.1} parent=5 // pred_region
        %s466 = ssub.s32 %s17, 2
        // Predicated region
        $region45: #{tpu_custom_call.1} parent=43 // pred_check
          %p467 = pneg %p116
        $region46: #{tpu_custom_call.1} parent=43 // pred_check_branch
          %469 = sbr.rel (%p467) target = $region48
        $region47: #{tpu_custom_call.1} parent=43 // pred_region
          %s470 = sand.u32 %s101, 1
          %s471 = scalar_lea.sflag [#allocation4], %s470
          %s472 = sand.u32 %s101, 1
          %s473 = smul.addr %s472, 2
          %s474 = scalar_lea.vmem [#allocation7], %s473
          %476 = dma.done %s471, 32
        $region48: #{tpu_custom_call.1} parent=43 // pred_fallthru
          _
      $region44: #{tpu_custom_call.1} parent=5 // pred_fallthru
        _
    $region6: #{tpu_custom_call.1} parent=1 // loop_footer
      %s21 = sadd.s32 1, %s17
    $region7: #{tpu_custom_call.1} parent=1 // loop_footer_branch
      %16 = sbr.rel target = $region3
    $region8: #{tpu_custom_call.1} parent=1 // loop_exit
      _
    %477 = vsyncpa [#allocation3], 1
    %s478 = scalar_lea.sflag [#allocation3], 1
    %479 = vsyncpa %s478, 1
    %480 = vsyncpa [#allocation6], 1
    %s481 = scalar_lea.sflag [#allocation6], 1
    %482 = vsyncpa %s481, 1
    %483 = vsyncpa [#allocation4], 1
    %s484 = scalar_lea.sflag [#allocation4], 1
    %485 = vsyncpa %s484, 1

</llo_original>
